<compile_context>
chip_gen: v5e
topology: v5e:2x2
jax: 0.10.0
libtpu: 0.0.40
codegen_flags: <defaults>
</compile_context>

<pallas_src>
import functools
import itertools

import numpy as np
import jax
import jax.numpy as jnp
from jax.experimental import pallas as pl
from jax.experimental.pallas import tpu as pltpu


# ----------------------------------------------------------------------------
# Folded DCT parameters (mirrors dct_8x8.__init__, with all constants folded)
# ----------------------------------------------------------------------------
def make_dct_params():
    """Returns (Wmat, bias) with
         Wmat[u*8+v, x*8+y] = 255 * cos((2x+1)u*pi/16) * cos((2y+1)v*pi/16) * scale[u,v]
         bias[u*8+v]        = -128 * sum_{x,y} cos(..)*cos(..) * scale[u,v]
       so that for a flattened 8x8 block p of pixels in [0,1] (x-major):
         coeff = Wmat @ p + bias  ==  scale * DCT2(255*p - 128)   (the torch math).
    """
    A = np.zeros((8, 8), dtype=np.float64)
    for x, u in itertools.product(range(8), repeat=2):
        A[x, u] = np.cos((2 * x + 1) * u * np.pi / 16)
    alpha = np.array([1.0 / np.sqrt(2)] + [1.0] * 7)
    scale8 = np.outer(alpha, alpha) * 0.25                       # (8, 8)
    D = np.einsum("xu,yv->xyuv", A, A).reshape(64, 64)           # D[x*8+y, u*8+v]
    DS = D * scale8.reshape(1, 64)                               # fold alpha/4
    Wmat = (255.0 * DS).T.astype(np.float32)                     # (64, 64), folds x255
    bias = (-128.0 * DS.sum(axis=0)).astype(np.float32)          # (64,), folds -128
    return jnp.asarray(Wmat), jnp.asarray(bias.reshape(64, 1))


# ----------------------------------------------------------------------------
# Pallas kernel: coeff_cols = Wmat @ pixel_cols + bias   (transposed layout)
# ----------------------------------------------------------------------------
def _dct_kernel(x_ref, w_ref, b_ref, o_ref, *, bt):
    # x_ref/o_ref: (bt, 64, tm)   w_ref: (64, 64)   b_ref: (64, 1)
    w = w_ref[...]
    bias = b_ref[...]
    for t in range(bt):                                    # small static unroll (bt <= 8)
        o_ref[t] = jnp.dot(w, x_ref[t],
                           preferred_element_type=jnp.float32) + bias


def _pick_tiles(batch, mcols):
    """Choose (batch_tile, col_tile, padded_cols) targeting ~0.5-2 MiB blocks."""
    blk_bytes = lambda t: 64 * t * 4
    if blk_bytes(mcols) <= (2 << 20):
        tm = mcols                                # whole per-image row of blocks
    else:
        tm = None
        for cand in (8192, 4096, 2048, 1024, 512, 256, 128):
            if mcols % cand == 0:
                tm = cand
                break
        if tm is None:                            # rare: no lane-aligned divisor
            tm = mcols if blk_bytes(mcols) <= (6 << 20) else 2048
    padded = ((mcols + tm - 1) // tm) * tm
    bt = 1
    while (bt * 2 <= min(batch, 8) and batch % (bt * 2) == 0
           and (bt * 2) * blk_bytes(tm) <= (2 << 20)):
        bt *= 2
    return bt, tm, padded


def dct_cols(xt, Wmat, bias):
    """xt: (B, 64, Mb) pixel columns -> (B, 64, Mb) DCT coefficient columns."""
    B, K, Mb = xt.shape
    assert K == 64
    bt, tm, Mb_p = _pick_tiles(B, Mb)
    if Mb_p != Mb:                                # rare; guarantees aligned tiles
        xt = jnp.pad(xt, ((0, 0), (0, 0), (0, Mb_p - Mb)))

    out = pl.pallas_call(
        functools.partial(_dct_kernel, bt=bt),
        out_shape=jax.ShapeDtypeStruct((B, 64, Mb_p), jnp.float32),
        grid=(B // bt, Mb_p // tm),
        in_specs=[
            pl.BlockSpec((bt, 64, tm), lambda bi, ci: (bi, 0, ci)),
            pl.BlockSpec((64, 64), lambda bi, ci: (0, 0)),   # resident (constant idx)
            pl.BlockSpec((64, 1), lambda bi, ci: (0, 0)),    # resident (constant idx)
        ],
        out_specs=pl.BlockSpec((bt, 64, tm), lambda bi, ci: (bi, 0, ci)),
        compiler_params=pltpu.CompilerParams(
            dimension_semantics=("parallel", "parallel")),
    )(xt, Wmat, bias)

    if Mb_p != Mb:
        out = out[:, :, :Mb]
    return out


# ----------------------------------------------------------------------------
# Full block_dct forward (one XLA transpose + Pallas matmul, free reshapes)
# ----------------------------------------------------------------------------
def block_dct_forward(image, Wmat, bias):
    """image: (B, 3, H, W) float32 in [0,1]  ->  (B, 192, H//8, W//8)."""
    B, C, H, W = image.shape
    assert C == 3 and H % 8 == 0 and W % 8 == 0
    hb, wb = H // 8, W // 8

    # (B, 3, hb, 8, wb, 8) -> (B, 8, 8, 3, hb, wb): the only XLA transpose pass.
    xt = image.reshape(B, C, hb, 8, wb, 8)
    xt = jnp.transpose(xt, (0, 3, 5, 1, 2, 4)).reshape(B, 64, C * hb * wb)

    coeff = dct_cols(xt, Wmat, bias)              # (B, 64, 3*hb*wb)

    # Rows are u*8+v, columns are (c, i, j)-ordered, so this reshape is free and
    # already matches torch's channel ordering u*24 + v*3 + c.
    return coeff.reshape(B, 192, hb, wb)


# ----------------------------------------------------------------------------
# Independent float64 numpy reference (mirrors the PyTorch math exactly)
# ----------------------------------------------------------------------------
def block_dct_reference(image_np):
    B, C, H, W = image_np.shape
    hb, wb = H // 8, W // 8
    A = np.zeros((8, 8), dtype=np.float64)
    for x, u in itertools.product(range(8), repeat=2):
        A[x, u] = np.cos((2 * x + 1) * u * np.pi / 16)
    alpha = np.array([1.0 / np.sqrt(2)] + [1.0] * 7)
    scale = (np.outer(alpha, alpha) * 0.25).reshape(1, 64)
    D = np.einsum("xu,yv->xyuv", A, A).reshape(64, 64)

    x = image_np.astype(np.float64) * 255.0
    xb = x.reshape(B, C, hb, 8, wb, 8).transpose(0, 2, 4, 1, 3, 5).reshape(-1, 64)
    coeff = ((xb - 128.0) @ D) * scale
    coeff = coeff.reshape(B, hb, wb, C, 8, 8)
    return np.transpose(coeff, (0, 4, 5, 3, 1, 2)).reshape(B, 192, hb, wb)


if __name__ == "__main__":
    key = jax.random.PRNGKey(0)
    B, C, H, W = 2, 3, 16, 16
    image = jax.random.uniform(key, (B, C, H, W), dtype=jnp.float32)

    Wmat, bias = make_dct_params()
    out = jax.block_until_ready(block_dct_forward(image, Wmat, bias))

    ref = block_dct_reference(np.asarray(image))
    assert out.shape == (B, 192, H // 8, W // 8), out.shape
    err = np.max(np.abs(np.asarray(out, dtype=np.float64) - ref))
    assert np.allclose(np.asarray(out), ref, rtol=2e-4, atol=5e-2), err

    print("KERNEL_OK")
</pallas_src>

<mosaic_0001>
module attributes {stable_mosaic.version = 11 : i64} {
  func.func @_dct_kernel(%arg0: i32, %arg1: i32, %arg2: memref<2x64x12xf32, #tpu.memory_space<vmem>>, %arg3: memref<64x64xf32, #tpu.memory_space<vmem>>, %arg4: memref<64x1xf32, #tpu.memory_space<vmem>>, %arg5: memref<2x64x12xf32, #tpu.memory_space<vmem>>) attributes {dimension_semantics = [#tpu.dimension_semantics<parallel>, #tpu.dimension_semantics<parallel>], iteration_bounds = array<i64: 1, 1>, scalar_prefetch = 0 : i64, scratch_operands = 0 : i64, tpu.core_type = #tpu.core_type<tc>, window_params = [{transform_indices = @transform_0, window_bounds = array<i64: 2, 64, 12>}, {pipeline_mode = #tpu.pipeline_mode<synchronous>, transform_indices = @transform_1, window_bounds = array<i64: 64, 64>}, {pipeline_mode = #tpu.pipeline_mode<synchronous>, transform_indices = @transform_2, window_bounds = array<i64: 64, 1>}, {transform_indices = @transform_3, window_bounds = array<i64: 2, 64, 12>}]} {
    %c0 = arith.constant 0 : index
    %c0_0 = arith.constant 0 : index
    %0 = vector.load %arg3[%c0, %c0_0] : memref<64x64xf32, #tpu.memory_space<vmem>>, vector<64x64xf32>
    %c0_1 = arith.constant 0 : index
    %c0_2 = arith.constant 0 : index
    %1 = vector.load %arg4[%c0_1, %c0_2] : memref<64x1xf32, #tpu.memory_space<vmem>>, vector<64x1xf32>
    %c0_3 = arith.constant 0 : index
    %c0_4 = arith.constant 0 : index
    %c0_5 = arith.constant 0 : index
    %2 = vector.load %arg2[%c0_3, %c0_4, %c0_5] : memref<2x64x12xf32, #tpu.memory_space<vmem>>, vector<1x64x12xf32>
    %3 = vector.shape_cast %2 : vector<1x64x12xf32> to vector<64x12xf32>
    %cst = arith.constant dense<0.000000e+00> : vector<64x12xf32>
    %4 = tpu.matmul %0, %3, %cst {dimension_numbers = #tpu.dot_dimension_numbers<[1], [0], [0], [1], [0, 0, 1, 1], [], []>} : vector<64x64xf32>, vector<64x12xf32>, vector<64x12xf32> -> vector<64x12xf32>
    %5 = vector.broadcast %1 : vector<64x1xf32> to vector<64x12xf32>
    %6 = arith.addf %4, %5 : vector<64x12xf32>
    %c0_6 = arith.constant 0 : index
    %c0_7 = arith.constant 0 : index
    %c0_8 = arith.constant 0 : index
    %7 = vector.load %arg5[%c0_6, %c0_7, %c0_8] : memref<2x64x12xf32, #tpu.memory_space<vmem>>, vector<1x64x12xf32>
    %8 = vector.shape_cast %7 : vector<1x64x12xf32> to vector<64x12xf32>
    %9 = vector.shape_cast %6 : vector<64x12xf32> to vector<1x64x12xf32>
    tpu.vector_store %arg5[%c0_6, %c0_7, %c0_8], %9 {strides = array<i32>} : memref<2x64x12xf32, #tpu.memory_space<vmem>>, vector<1x64x12xf32>,
    %c1 = arith.constant 1 : index
    %c0_9 = arith.constant 0 : index
    %c0_10 = arith.constant 0 : index
    %10 = vector.load %arg2[%c1, %c0_9, %c0_10] : memref<2x64x12xf32, #tpu.memory_space<vmem>>, vector<1x64x12xf32>
    %11 = vector.shape_cast %10 : vector<1x64x12xf32> to vector<64x12xf32>
    %cst_11 = arith.constant dense<0.000000e+00> : vector<64x12xf32>
    %12 = tpu.matmul %0, %11, %cst_11 {dimension_numbers = #tpu.dot_dimension_numbers<[1], [0], [0], [1], [0, 0, 1, 1], [], []>} : vector<64x64xf32>, vector<64x12xf32>, vector<64x12xf32> -> vector<64x12xf32>
    %13 = vector.broadcast %1 : vector<64x1xf32> to vector<64x12xf32>
    %14 = arith.addf %12, %13 : vector<64x12xf32>
    %c1_12 = arith.constant 1 : index
    %c0_13 = arith.constant 0 : index
    %c0_14 = arith.constant 0 : index
    %15 = vector.load %arg5[%c1_12, %c0_13, %c0_14] : memref<2x64x12xf32, #tpu.memory_space<vmem>>, vector<1x64x12xf32>
    %16 = vector.shape_cast %15 : vector<1x64x12xf32> to vector<64x12xf32>
    %17 = vector.shape_cast %14 : vector<64x12xf32> to vector<1x64x12xf32>
    tpu.vector_store %arg5[%c1_12, %c0_13, %c0_14], %17 {strides = array<i32>} : memref<2x64x12xf32, #tpu.memory_space<vmem>>, vector<1x64x12xf32>,
    return
  }
  func.func @transform_0(%arg0: i32, %arg1: i32) -> (i32, i32, i32) {
    %c0_i32 = arith.constant 0 : i32
    %c0_i32_0 = arith.constant 0 : i32
    return %arg0, %c0_i32, %arg1 : i32, i32, i32
  }
  func.func @transform_1(%arg0: i32, %arg1: i32) -> (i32, i32) {
    %c0_i32 = arith.constant 0 : i32
    %c0_i32_0 = arith.constant 0 : i32
    %c0_i32_1 = arith.constant 0 : i32
    return %c0_i32, %c0_i32_0 : i32, i32
  }
  func.func @transform_2(%arg0: i32, %arg1: i32) -> (i32, i32) {
    %c0_i32 = arith.constant 0 : i32
    %c0_i32_0 = arith.constant 0 : i32
    %c0_i32_1 = arith.constant 0 : i32
    return %c0_i32, %c0_i32_0 : i32, i32
  }
  func.func @transform_3(%arg0: i32, %arg1: i32) -> (i32, i32, i32) {
    %c0_i32 = arith.constant 0 : i32
    %c0_i32_0 = arith.constant 0 : i32
    return %arg0, %c0_i32, %arg1 : i32, i32, i32
  }
}

</mosaic_0001>

<llo_original>
// kernel: tpu_custom_call.1
$region0: #{tpu_custom_call.1}
  #allocation0 [shape = 'u32[]', space=smem, size = 0x4, offset = 0x4, fixed_abs, tag = 'smem constant byte address 0x4 - core index']
  #allocation1 [shape = 'u32[72,128]{1,0:T(1,128)}', space=vmem, size = 0x9000, scoped, tag = 'internal scratch']
  %s0 = inlined_call_operand.vmem [shape: f32[2,64,12], index: 0, kind: input, shape index: {}]
  %s1 = inlined_call_operand.vmem [shape: f32[64,64], index: 1, kind: input, shape index: {}]
  %s2 = inlined_call_operand.vmem [shape: f32[64,1], index: 2, kind: input, shape index: {}]
  %s3 = inlined_call_operand.vmem [shape: f32[2,64,12], index: 3, kind: output, shape index: {}]
  %s4 = sld [smem:[#allocation0]]
  $region22: #{tpu_custom_call.1} parent=0
    _
  %s6 = ssub.s32 1, %s4
  %s7 = scalar_select 0, %s6, %s4
  // Predicated region
  $region2: #{tpu_custom_call.1} parent=0 // pred_check
    _
  $region3: #{tpu_custom_call.1} parent=0 // pred_check_branch
    %9 = sbr.rel (0) target = $region5
  $region4: #{tpu_custom_call.1} parent=0 // pred_region
    _
  $region5: #{tpu_custom_call.1} parent=0 // pred_fallthru
    _
  // Predicated region
  $region6: #{tpu_custom_call.1} parent=0 // pred_check
    _
  $region7: #{tpu_custom_call.1} parent=0 // pred_check_branch
    %11 = sbr.rel (0) target = $region9
  $region8: #{tpu_custom_call.1} parent=0 // pred_region
    _
  $region9: #{tpu_custom_call.1} parent=0 // pred_fallthru
    _
  // Predicated region
  $region10: #{tpu_custom_call.1} parent=0 // pred_check
    _
  $region11: #{tpu_custom_call.1} parent=0 // pred_check_branch
    %13 = sbr.rel (0) target = $region13
  $region12: #{tpu_custom_call.1} parent=0 // pred_region
    _
  $region13: #{tpu_custom_call.1} parent=0 // pred_fallthru
    _
  %v14 = vld [vmem:[%s1] sm:$0xff]
  %v15 = vld [vmem:[%s1 + $0x8] sm:$0xff]
  %v16 = vld [vmem:[%s1 + $0x10] sm:$0xff]
  %v17 = vld [vmem:[%s1 + $0x18] sm:$0xff]
  %v18 = vld [vmem:[%s1 + $0x20] sm:$0xff]
  %v19 = vld [vmem:[%s1 + $0x28] sm:$0xff]
  %v20 = vld [vmem:[%s1 + $0x30] sm:$0xff]
  %v21 = vld [vmem:[%s1 + $0x38] sm:$0xff]
  %v22 = vld [vmem:[%s2] sm:$0xff]
  %v23 = vld [vmem:[%s2 + $0x8] sm:$0xff]
  %v24 = vld [vmem:[%s2 + $0x10] sm:$0xff]
  %v25 = vld [vmem:[%s2 + $0x18] sm:$0xff]
  %v26 = vld [vmem:[%s2 + $0x20] sm:$0xff]
  %v27 = vld [vmem:[%s2 + $0x28] sm:$0xff]
  %v28 = vld [vmem:[%s2 + $0x30] sm:$0xff]
  %v29 = vld [vmem:[%s2 + $0x38] sm:$0xff]
  %v30 = vld [vmem:[%s0] sm:$0xff]
  %v31 = vld [vmem:[%s0 + $0x8] sm:$0xff]
  %v32 = vld [vmem:[%s0 + $0x10] sm:$0xff]
  %v33 = vld [vmem:[%s0 + $0x18] sm:$0xff]
  %v34 = vld [vmem:[%s0 + $0x20] sm:$0xff]
  %v35 = vld [vmem:[%s0 + $0x28] sm:$0xff]
  %v36 = vld [vmem:[%s0 + $0x30] sm:$0xff]
  %v37 = vld [vmem:[%s0 + $0x38] sm:$0xff]
  %39 = vset.pattern.permute.xlu0 0
  %40 = vperm.xlu0 %39, %v22
  %v41 = vpop.permute.xlu0 %40
  %44 = vset.pattern.permute.xlu0 0
  %45 = vperm.xlu0 %44, %v23
  %v46 = vpop.permute.xlu0 %45
  %49 = vset.pattern.permute.xlu0 0
  %50 = vperm.xlu0 %49, %v24
  %v51 = vpop.permute.xlu0 %50
  %54 = vset.pattern.permute.xlu0 0
  %55 = vperm.xlu0 %54, %v25
  %v56 = vpop.permute.xlu0 %55
  %59 = vset.pattern.permute.xlu0 0
  %60 = vperm.xlu0 %59, %v26
  %v61 = vpop.permute.xlu0 %60
  %64 = vset.pattern.permute.xlu0 0
  %65 = vperm.xlu0 %64, %v27
  %v66 = vpop.permute.xlu0 %65
  %69 = vset.pattern.permute.xlu0 0
  %70 = vperm.xlu0 %69, %v28
  %v71 = vpop.permute.xlu0 %70
  %74 = vset.pattern.permute.xlu0 0
  %75 = vperm.xlu0 %74, %v29
  %v76 = vpop.permute.xlu0 %75
  %vm78 = vcmask 523264
  %v80 = vsel %vm78, %v14, 0
  %v83 = vsel %vm78, %v15, 0
  %v86 = vsel %vm78, %v16, 0
  %v89 = vsel %vm78, %v17, 0
  %v92 = vsel %vm78, %v18, 0
  %v95 = vsel %vm78, %v19, 0
  %v98 = vsel %vm78, %v20, 0
  %v101 = vsel %vm78, %v21, 0
  %103 = vmatpush.msra.mxu0 0.0
  %104 = vmatpush.msra.mxu0 0.0
  %105 = vmatpush.msra.mxu0 0.0
  %106 = vmatpush.msra.mxu0 0.0
  %107 = vmatpush.msra.mxu0 0.0
  %108 = vmatpush.msra.mxu0 0.0
  %109 = vmatpush.msra.mxu0 0.0
  %110 = vmatpush.msra.mxu0 0.0
  %111 = vmatpush.msra.mxu0 %v37
  %112 = vmatpush.msra.mxu0 %v36
  %113 = vmatpush.msra.mxu0 %v35
  %114 = vmatpush.msra.mxu0 %v34
  %115 = vmatpush.msra.mxu0 %v33
  %116 = vmatpush.msra.mxu0 %v32
  %117 = vmatpush.msra.mxu0 %v31
  %118 = vmatpush.msra.mxu0 %v30
  %119 = vmatmul.f32.gmra.mxu0 %v80
  %v120 = vpop.f32.mrf.mxu0
  %v121 = vadd.f32 %v41, %v120
  %122 = vmatmul.f32.gmra.mxu0 %v83
  %v123 = vpop.f32.mrf.mxu0
  %v124 = vadd.f32 %v46, %v123
  %125 = vmatmul.f32.gmra.mxu0 %v86
  %v126 = vpop.f32.mrf.mxu0
  %v127 = vadd.f32 %v51, %v126
  %128 = vmatmul.f32.gmra.mxu0 %v89
  %v129 = vpop.f32.mrf.mxu0
  %v130 = vadd.f32 %v56, %v129
  %131 = vmatmul.f32.gmra.mxu0 %v92
  %v132 = vpop.f32.mrf.mxu0
  %v133 = vadd.f32 %v61, %v132
  %134 = vmatmul.f32.gmra.mxu0 %v95
  %v135 = vpop.f32.mrf.mxu0
  %v136 = vadd.f32 %v66, %v135
  %137 = vmatmul.f32.gmra.mxu0 %v98
  %v138 = vpop.f32.mrf.mxu0
  %v139 = vadd.f32 %v71, %v138
  %140 = vmatmul.f32.gmra.mxu0 %v101
  %v141 = vpop.f32.mrf.mxu0
  %v142 = vadd.f32 %v76, %v141
  %143 = vdwg.mxu0
  %vm144 = vcmask 97280
  %145 = vst.msk [vmem:[%s3] sm:$0xff] %vm144, %v121
  %146 = vst.msk [vmem:[%s3 + $0x8] sm:$0xff] %vm144, %v124
  %147 = vst.msk [vmem:[%s3 + $0x10] sm:$0xff] %vm144, %v127
  %148 = vst.msk [vmem:[%s3 + $0x18] sm:$0xff] %vm144, %v130
  %149 = vst.msk [vmem:[%s3 + $0x20] sm:$0xff] %vm144, %v133
  %150 = vst.msk [vmem:[%s3 + $0x28] sm:$0xff] %vm144, %v136
  %151 = vst.msk [vmem:[%s3 + $0x30] sm:$0xff] %vm144, %v139
  %152 = vst.msk [vmem:[%s3 + $0x38] sm:$0xff] %vm144, %v142
  %s153 = scalar_lea.vmem %s0, 64
  %v154 = vld [vmem:[%s153] sm:$0xff]
  %v155 = vld [vmem:[%s153 + $0x8] sm:$0xff]
  %v156 = vld [vmem:[%s153 + $0x10] sm:$0xff]
  %v157 = vld [vmem:[%s153 + $0x18] sm:$0xff]
  %v158 = vld [vmem:[%s153 + $0x20] sm:$0xff]
  %v159 = vld [vmem:[%s153 + $0x28] sm:$0xff]
  %v160 = vld [vmem:[%s153 + $0x30] sm:$0xff]
  %v161 = vld [vmem:[%s153 + $0x38] sm:$0xff]
  %162 = vmatpush.msra.mxu0 0.0
  %163 = vmatpush.msra.mxu0 0.0
  %164 = vmatpush.msra.mxu0 0.0
  %165 = vmatpush.msra.mxu0 0.0
  %166 = vmatpush.msra.mxu0 0.0
  %167 = vmatpush.msra.mxu0 0.0
  %168 = vmatpush.msra.mxu0 0.0
  %169 = vmatpush.msra.mxu0 0.0
  %170 = vmatpush.msra.mxu0 %v161
  %171 = vmatpush.msra.mxu0 %v160
  %172 = vmatpush.msra.mxu0 %v159
  %173 = vmatpush.msra.mxu0 %v158
  %174 = vmatpush.msra.mxu0 %v157
  %175 = vmatpush.msra.mxu0 %v156
  %176 = vmatpush.msra.mxu0 %v155
  %177 = vmatpush.msra.mxu0 %v154
  %178 = vmatmul.f32.gmra.mxu0 %v80
  %v179 = vpop.f32.mrf.mxu0
  %v180 = vadd.f32 %v41, %v179
  %181 = vmatmul.f32.gmra.mxu0 %v83
  %v182 = vpop.f32.mrf.mxu0
  %v183 = vadd.f32 %v46, %v182
  %184 = vmatmul.f32.gmra.mxu0 %v86
  %v185 = vpop.f32.mrf.mxu0
  %v186 = vadd.f32 %v51, %v185
  %187 = vmatmul.f32.gmra.mxu0 %v89
  %v188 = vpop.f32.mrf.mxu0
  %v189 = vadd.f32 %v56, %v188
  %190 = vmatmul.f32.gmra.mxu0 %v92
  %v191 = vpop.f32.mrf.mxu0
  %v192 = vadd.f32 %v61, %v191
  %193 = vmatmul.f32.gmra.mxu0 %v95
  %v194 = vpop.f32.mrf.mxu0
  %v195 = vadd.f32 %v66, %v194
  %196 = vmatmul.f32.gmra.mxu0 %v98
  %v197 = vpop.f32.mrf.mxu0
  %v198 = vadd.f32 %v71, %v197
  %199 = vmatmul.f32.gmra.mxu0 %v101
  %v200 = vpop.f32.mrf.mxu0
  %v201 = vadd.f32 %v76, %v200
  %202 = vdwg.mxu0
  %s203 = scalar_lea.vmem %s3, 64
  %204 = vst.msk [vmem:[%s203] sm:$0xff] %vm144, %v180
  %205 = vst.msk [vmem:[%s203 + $0x8] sm:$0xff] %vm144, %v183
  %206 = vst.msk [vmem:[%s203 + $0x10] sm:$0xff] %vm144, %v186
  %207 = vst.msk [vmem:[%s203 + $0x18] sm:$0xff] %vm144, %v189
  %208 = vst.msk [vmem:[%s203 + $0x20] sm:$0xff] %vm144, %v192
  %209 = vst.msk [vmem:[%s203 + $0x28] sm:$0xff] %vm144, %v195
  %210 = vst.msk [vmem:[%s203 + $0x30] sm:$0xff] %vm144, %v198
  %211 = vst.msk [vmem:[%s203 + $0x38] sm:$0xff] %vm144, %v201
  // Predicated region
  $region14: #{tpu_custom_call.1} parent=0 // pred_check
    _
  $region15: #{tpu_custom_call.1} parent=0 // pred_check_branch
    %213 = sbr.rel (0) target = $region17
  $region16: #{tpu_custom_call.1} parent=0 // pred_region
    _
  $region17: #{tpu_custom_call.1} parent=0 // pred_fallthru
    _
  // Predicated region
  $region18: #{tpu_custom_call.1} parent=0 // pred_check
    _
  $region19: #{tpu_custom_call.1} parent=0 // pred_check_branch
    %215 = sbr.rel (0) target = $region21
  $region20: #{tpu_custom_call.1} parent=0 // pred_region
    _
  $region21: #{tpu_custom_call.1} parent=0 // pred_fallthru
    _

</llo_original>
